<compile_context>
chip_gen: v7x
topology: tpu7x:2x2x1
jax: 0.10.0
libtpu: 0.0.40
codegen_flags: <defaults>
</compile_context>

<pallas_src>
import jax
import jax.numpy as jnp
import numpy as np
from jax.experimental import pallas as pl
from jax.experimental.pallas import tpu as pltpu

LANE = 128
SUB = 16          # batch-tile granularity (covers f32 and bf16 sublane packing)


def _round_up(x, m):
    return (x + m - 1) // m * m


def mlp_kernel(x_ref, w1_ref, b1_ref, w2_ref, b2_ref, w3_ref, b3_ref,
               w4_ref, b4_ref, o_ref):
    def layer(h, w_ref, b_ref, relu):
        y = jnp.dot(h.astype(w_ref.dtype), w_ref[...],
                    preferred_element_type=jnp.float32)
        y = y + b_ref[...]                 # (1, N) bias broadcast, f32
        return jnp.maximum(y, 0.0) if relu else y

    h = jnp.tanh(x_ref[...].astype(jnp.float32))   # elementwise math stays f32
    h = layer(h, w1_ref, b1_ref, True)
    h = layer(h, w2_ref, b2_ref, True)
    h = layer(h, w3_ref, b3_ref, True)
    h = layer(h, w4_ref, b4_ref, False)
    o_ref[...] = h.astype(o_ref.dtype)


def pad_params(params, compute_dtype=jnp.bfloat16):
    """Zero-pad hidden feature dims to multiples of 128; keep the input feature
    dim of fc1 and the output dim of fc4 at their real sizes.  Done once."""
    in_dim = params["w1"].shape[0]
    h1, h2, h3, h4 = (params[f"w{i}"].shape[1] for i in range(1, 5))
    col_pad = [_round_up(h1, LANE), _round_up(h2, LANE), _round_up(h3, LANE), h4]
    row_pad = [in_dim, col_pad[0], col_pad[1], col_pad[2]]

    out = {"dims": (in_dim, h1, h2, h3, h4)}
    for i in range(1, 5):
        w, b = params[f"w{i}"], params[f"b{i}"]
        rp, cp = row_pad[i - 1], col_pad[i - 1]
        wp = jnp.zeros((rp, cp), compute_dtype).at[: w.shape[0], : w.shape[1]].set(
            w.astype(compute_dtype))
        bp = jnp.zeros((1, cp), jnp.float32).at[:, : b.shape[1]].set(
            b.astype(jnp.float32))
        out[f"w{i}"], out[f"b{i}"] = wp, bp
    return out


def _auto_block_batch(B, max_bm):
    """Pick the batch tile so the grid has 1–2 steps (2 when splittable, so both
    v7x TensorCores get work), capped at max_bm rows to bound VMEM."""
    B_pad = _round_up(B, SUB)
    if B_pad <= 2 * max_bm:
        n = 2 if B_pad >= 2 * SUB else 1
    else:
        n = pl.cdiv(B_pad, max_bm)
        n += n % 2            # even block count -> megacore-friendly
    return _round_up(pl.cdiv(B_pad, n), SUB)


def mlp_forward(x, pparams, *, block_batch=None, max_block_batch=4096):
    """x: (B, in_dim) float; pparams: output of pad_params()."""
    in_dim, h1, h2, h3, h4 = pparams["dims"]
    compute_dtype = pparams["w1"].dtype
    w_itemsize = jnp.dtype(compute_dtype).itemsize

    B = x.shape[0]
    assert x.shape[1] == in_dim

    if block_batch is None:
        bm = _auto_block_batch(B, max_block_batch)
    else:
        bm = _round_up(min(block_batch, _round_up(B, SUB)), SUB)
    B_pad = _round_up(B, bm)
    grid = (B_pad // bm,)

    x = x.astype(jnp.float32)
    x_p = x if B_pad == B else jnp.zeros((B_pad, in_dim), jnp.float32).at[:B].set(x)

    h1_p = pparams["w1"].shape[1]
    h2_p = pparams["w2"].shape[1]
    h3_p = pparams["w3"].shape[1]

    def resident(shape):
        # Full-array block, constant index_map -> stays VMEM-resident across the
        # batch grid (no per-step re-DMA).
        return pl.BlockSpec(shape, lambda i: (0, 0))

    in_specs = [
        pl.BlockSpec((bm, in_dim), lambda i: (i, 0)),   # real (unpadded) feature dim
        resident((in_dim, h1_p)), resident((1, h1_p)),
        resident((h1_p, h2_p)), resident((1, h2_p)),
        resident((h2_p, h3_p)), resident((1, h3_p)),
        resident((h3_p, h4)), resident((1, h4)),        # fc4 keeps real output dim
    ]
    out_specs = pl.BlockSpec((bm, h4), lambda i: (i, 0))

    # Cost estimate from the REAL (unpadded) dims.
    mac = in_dim * h1 + h1 * h2 + h2 * h3 + h3 * h4
    flops = 2 * B * mac
    bytes_accessed = (B * in_dim * 4
                      + mac * w_itemsize + (h1 + h2 + h3 + h4) * 4
                      + B * h4 * 4)
    cost = pl.CostEstimate(flops=flops, transcendentals=B * in_dim,
                           bytes_accessed=bytes_accessed)

    # VMEM at bm<=4096: ~5 f32 (bm,128) intermediates + double-buffered (bm,16)
    # x/out tiles + <0.3 MiB weights  -> well under the 32 MiB scoped default on
    # every generation (and under v7x's 64 MiB physical), so no explicit
    # vmem_limit_bytes is needed; re-derive if max_block_batch is raised.
    out = pl.pallas_call(
        mlp_kernel,
        out_shape=jax.ShapeDtypeStruct((B_pad, h4), jnp.float32),
        grid=grid,
        in_specs=in_specs,
        out_specs=out_specs,
        compiler_params=pltpu.CompilerParams(
            dimension_semantics=("parallel",)),
        cost_estimate=cost,
    )(x_p,
      pparams["w1"], pparams["b1"],
      pparams["w2"], pparams["b2"],
      pparams["w3"], pparams["b3"],
      pparams["w4"], pparams["b4"])

    return out if B_pad == B else out[:B]


# ----------------------------- setup / reference -----------------------------

def xavier_normal(key, fan_in, fan_out):
    std = float(np.sqrt(2.0 / (fan_in + fan_out)))
    # PyTorch Linear weight is (out, in); generate that, store transposed (in, out).
    w = jax.random.normal(key, (fan_out, fan_in), dtype=jnp.float32) * std
    return w.T


def make_params(key, dims):
    # dims = [input_dim, h1, h2, h3, h4]  (fc4 output = h4)
    keys = jax.random.split(key, 4)
    params = {}
    for i in range(4):
        params[f"w{i+1}"] = xavier_normal(keys[i], dims[i], dims[i + 1])
        params[f"b{i+1}"] = jnp.zeros((1, dims[i + 1]), dtype=jnp.float32)
    return params


def reference_forward(x, params):
    h = jnp.tanh(x)
    h = jnp.maximum(h @ params["w1"] + params["b1"], 0.0)
    h = jnp.maximum(h @ params["w2"] + params["b2"], 0.0)
    h = jnp.maximum(h @ params["w3"] + params["b3"], 0.0)
    return h @ params["w4"] + params["b4"]


if __name__ == "__main__":
    key = jax.random.PRNGKey(0)
    k_x, k_p, k_x2 = jax.random.split(key, 3)

    input_dim, h1, h2, h3, h4 = 16, 32, 64, 32, 16
    params = make_params(k_p, [input_dim, h1, h2, h3, h4])

    # ---- small batch (module-consistent), f32 weights, single grid step ------
    x_small = jax.random.normal(k_x, (8, input_dim), dtype=jnp.float32)
    pp_f32 = pad_params(params, jnp.float32)
    out_small = jax.block_until_ready(mlp_forward(x_small, pp_f32))
    ref_small = reference_forward(x_small, params)
    np.testing.assert_allclose(np.asarray(out_small), np.asarray(ref_small),
                               rtol=1e-5, atol=1e-5)

    # ---- larger batch: auto tiling gives 2 batch blocks (megacore-friendly) ---
    x_big = jax.random.normal(k_x2, (512, input_dim), dtype=jnp.float32)
    out_big = jax.block_until_ready(mlp_forward(x_big, pp_f32))
    ref_big = reference_forward(x_big, params)
    np.testing.assert_allclose(np.asarray(out_big), np.asarray(ref_big),
                               rtol=1e-5, atol=1e-5)

    # ---- default path: bf16 weights (MXU fast path), f32 x / accumulation ----
    pp_bf16 = pad_params(params)          # compute_dtype defaults to bf16
    out_bf16 = jax.block_until_ready(mlp_forward(x_big, pp_bf16))
    params_bf16 = {k: v.astype(jnp.bfloat16).astype(jnp.float32)
                   for k, v in params.items()}
    ref_bf16 = reference_forward(x_big, params_bf16)
    np.testing.assert_allclose(np.asarray(out_bf16), np.asarray(ref_bf16),
                               rtol=5e-2, atol=5e-2)

    print("KERNEL_OK")
</pallas_src>

<mosaic_0001>
module attributes {stable_mosaic.version = 11 : i64} {
  func.func @mlp_kernel(%arg0: i32, %arg1: memref<16x16xf32, #tpu.memory_space<vmem>>, %arg2: memref<16x128xf32, #tpu.memory_space<vmem>>, %arg3: memref<1x128xf32, #tpu.memory_space<vmem>>, %arg4: memref<128x128xf32, #tpu.memory_space<vmem>>, %arg5: memref<1x128xf32, #tpu.memory_space<vmem>>, %arg6: memref<128x128xf32, #tpu.memory_space<vmem>>, %arg7: memref<1x128xf32, #tpu.memory_space<vmem>>, %arg8: memref<128x16xf32, #tpu.memory_space<vmem>>, %arg9: memref<1x16xf32, #tpu.memory_space<vmem>>, %arg10: memref<16x16xf32, #tpu.memory_space<vmem>>) attributes {dimension_semantics = [#tpu.dimension_semantics<parallel>], iteration_bounds = array<i64: 1>, scalar_prefetch = 0 : i64, scratch_operands = 0 : i64, tpu.core_type = #tpu.core_type<tc>, window_params = [{transform_indices = @transform_0, window_bounds = array<i64: 16, 16>}, {pipeline_mode = #tpu.pipeline_mode<synchronous>, transform_indices = @transform_1, window_bounds = array<i64: 16, 128>}, {pipeline_mode = #tpu.pipeline_mode<synchronous>, transform_indices = @transform_2, window_bounds = array<i64: 1, 128>}, {pipeline_mode = #tpu.pipeline_mode<synchronous>, transform_indices = @transform_3, window_bounds = array<i64: 128, 128>}, {pipeline_mode = #tpu.pipeline_mode<synchronous>, transform_indices = @transform_4, window_bounds = array<i64: 1, 128>}, {pipeline_mode = #tpu.pipeline_mode<synchronous>, transform_indices = @transform_5, window_bounds = array<i64: 128, 128>}, {pipeline_mode = #tpu.pipeline_mode<synchronous>, transform_indices = @transform_6, window_bounds = array<i64: 1, 128>}, {pipeline_mode = #tpu.pipeline_mode<synchronous>, transform_indices = @transform_7, window_bounds = array<i64: 128, 16>}, {pipeline_mode = #tpu.pipeline_mode<synchronous>, transform_indices = @transform_8, window_bounds = array<i64: 1, 16>}, {transform_indices = @transform_9, window_bounds = array<i64: 16, 16>}]} {
    %c0 = arith.constant 0 : index
    %c0_0 = arith.constant 0 : index
    %0 = vector.load %arg1[%c0, %c0_0] : memref<16x16xf32, #tpu.memory_space<vmem>>, vector<16x16xf32>
    %1 = math.tanh %0 : vector<16x16xf32>
    %c0_1 = arith.constant 0 : index
    %c0_2 = arith.constant 0 : index
    %2 = vector.load %arg2[%c0_1, %c0_2] : memref<16x128xf32, #tpu.memory_space<vmem>>, vector<16x128xf32>
    %cst = arith.constant dense<0.000000e+00> : vector<16x128xf32>
    %3 = tpu.matmul %1, %2, %cst {dimension_numbers = #tpu.dot_dimension_numbers<[1], [0], [0], [1], [0, 0, 1, 1], [], []>} : vector<16x16xf32>, vector<16x128xf32>, vector<16x128xf32> -> vector<16x128xf32>
    %c0_3 = arith.constant 0 : index
    %c0_4 = arith.constant 0 : index
    %4 = vector.load %arg3[%c0_3, %c0_4] : memref<1x128xf32, #tpu.memory_space<vmem>>, vector<1x128xf32>
    %5 = vector.broadcast %4 : vector<1x128xf32> to vector<16x128xf32>
    %6 = arith.addf %3, %5 : vector<16x128xf32>
    %cst_5 = arith.constant 0.000000e+00 : f32
    %7 = vector.broadcast %cst_5 : f32 to vector<16x128xf32>
    %8 = arith.maximumf %6, %7 : vector<16x128xf32>
    %c0_6 = arith.constant 0 : index
    %c0_7 = arith.constant 0 : index
    %9 = vector.load %arg4[%c0_6, %c0_7] : memref<128x128xf32, #tpu.memory_space<vmem>>, vector<128x128xf32>
    %cst_8 = arith.constant dense<0.000000e+00> : vector<16x128xf32>
    %10 = tpu.matmul %8, %9, %cst_8 {dimension_numbers = #tpu.dot_dimension_numbers<[1], [0], [0], [1], [0, 0, 1, 1], [], []>} : vector<16x128xf32>, vector<128x128xf32>, vector<16x128xf32> -> vector<16x128xf32>
    %c0_9 = arith.constant 0 : index
    %c0_10 = arith.constant 0 : index
    %11 = vector.load %arg5[%c0_9, %c0_10] : memref<1x128xf32, #tpu.memory_space<vmem>>, vector<1x128xf32>
    %12 = vector.broadcast %11 : vector<1x128xf32> to vector<16x128xf32>
    %13 = arith.addf %10, %12 : vector<16x128xf32>
    %cst_11 = arith.constant 0.000000e+00 : f32
    %14 = vector.broadcast %cst_11 : f32 to vector<16x128xf32>
    %15 = arith.maximumf %13, %14 : vector<16x128xf32>
    %c0_12 = arith.constant 0 : index
    %c0_13 = arith.constant 0 : index
    %16 = vector.load %arg6[%c0_12, %c0_13] : memref<128x128xf32, #tpu.memory_space<vmem>>, vector<128x128xf32>
    %cst_14 = arith.constant dense<0.000000e+00> : vector<16x128xf32>
    %17 = tpu.matmul %15, %16, %cst_14 {dimension_numbers = #tpu.dot_dimension_numbers<[1], [0], [0], [1], [0, 0, 1, 1], [], []>} : vector<16x128xf32>, vector<128x128xf32>, vector<16x128xf32> -> vector<16x128xf32>
    %c0_15 = arith.constant 0 : index
    %c0_16 = arith.constant 0 : index
    %18 = vector.load %arg7[%c0_15, %c0_16] : memref<1x128xf32, #tpu.memory_space<vmem>>, vector<1x128xf32>
    %19 = vector.broadcast %18 : vector<1x128xf32> to vector<16x128xf32>
    %20 = arith.addf %17, %19 : vector<16x128xf32>
    %cst_17 = arith.constant 0.000000e+00 : f32
    %21 = vector.broadcast %cst_17 : f32 to vector<16x128xf32>
    %22 = arith.maximumf %20, %21 : vector<16x128xf32>
    %c0_18 = arith.constant 0 : index
    %c0_19 = arith.constant 0 : index
    %23 = vector.load %arg8[%c0_18, %c0_19] : memref<128x16xf32, #tpu.memory_space<vmem>>, vector<128x16xf32>
    %cst_20 = arith.constant dense<0.000000e+00> : vector<16x16xf32>
    %24 = tpu.matmul %22, %23, %cst_20 {dimension_numbers = #tpu.dot_dimension_numbers<[1], [0], [0], [1], [0, 0, 1, 1], [], []>} : vector<16x128xf32>, vector<128x16xf32>, vector<16x16xf32> -> vector<16x16xf32>
    %c0_21 = arith.constant 0 : index
    %c0_22 = arith.constant 0 : index
    %25 = vector.load %arg9[%c0_21, %c0_22] : memref<1x16xf32, #tpu.memory_space<vmem>>, vector<1x16xf32>
    %26 = vector.broadcast %25 : vector<1x16xf32> to vector<16x16xf32>
    %27 = arith.addf %24, %26 : vector<16x16xf32>
    %c0_23 = arith.constant 0 : index
    %c0_24 = arith.constant 0 : index
    %28 = vector.load %arg10[%c0_23, %c0_24] : memref<16x16xf32, #tpu.memory_space<vmem>>, vector<16x16xf32>
    tpu.vector_store %arg10[%c0_23, %c0_24], %27 {strides = array<i32>} : memref<16x16xf32, #tpu.memory_space<vmem>>, vector<16x16xf32>,
    return
  }
  func.func @transform_0(%arg0: i32) -> (i32, i32) {
    %c0_i32 = arith.constant 0 : i32
    %c0_i32_0 = arith.constant 0 : i32
    return %arg0, %c0_i32 : i32, i32
  }
  func.func @transform_1(%arg0: i32) -> (i32, i32) {
    %c0_i32 = arith.constant 0 : i32
    %c0_i32_0 = arith.constant 0 : i32
    %c0_i32_1 = arith.constant 0 : i32
    return %c0_i32, %c0_i32_0 : i32, i32
  }
  func.func @transform_2(%arg0: i32) -> (i32, i32) {
    %c0_i32 = arith.constant 0 : i32
    %c0_i32_0 = arith.constant 0 : i32
    %c0_i32_1 = arith.constant 0 : i32
    return %c0_i32, %c0_i32_0 : i32, i32
  }
  func.func @transform_3(%arg0: i32) -> (i32, i32) {
    %c0_i32 = arith.constant 0 : i32
    %c0_i32_0 = arith.constant 0 : i32
    %c0_i32_1 = arith.constant 0 : i32
    return %c0_i32, %c0_i32_0 : i32, i32
  }
  func.func @transform_4(%arg0: i32) -> (i32, i32) {
    %c0_i32 = arith.constant 0 : i32
    %c0_i32_0 = arith.constant 0 : i32
    %c0_i32_1 = arith.constant 0 : i32
    return %c0_i32, %c0_i32_0 : i32, i32
  }
  func.func @transform_5(%arg0: i32) -> (i32, i32) {
    %c0_i32 = arith.constant 0 : i32
    %c0_i32_0 = arith.constant 0 : i32
    %c0_i32_1 = arith.constant 0 : i32
    return %c0_i32, %c0_i32_0 : i32, i32
  }
  func.func @transform_6(%arg0: i32) -> (i32, i32) {
    %c0_i32 = arith.constant 0 : i32
    %c0_i32_0 = arith.constant 0 : i32
    %c0_i32_1 = arith.constant 0 : i32
    return %c0_i32, %c0_i32_0 : i32, i32
  }
  func.func @transform_7(%arg0: i32) -> (i32, i32) {
    %c0_i32 = arith.constant 0 : i32
    %c0_i32_0 = arith.constant 0 : i32
    %c0_i32_1 = arith.constant 0 : i32
    return %c0_i32, %c0_i32_0 : i32, i32
  }
  func.func @transform_8(%arg0: i32) -> (i32, i32) {
    %c0_i32 = arith.constant 0 : i32
    %c0_i32_0 = arith.constant 0 : i32
    %c0_i32_1 = arith.constant 0 : i32
    return %c0_i32, %c0_i32_0 : i32, i32
  }
  func.func @transform_9(%arg0: i32) -> (i32, i32) {
    %c0_i32 = arith.constant 0 : i32
    %c0_i32_0 = arith.constant 0 : i32
    return %arg0, %c0_i32 : i32, i32
  }
}

</mosaic_0001>

<llo_original>
// kernel: tpu_custom_call.1
$region0: #{tpu_custom_call.1}
  #allocation0 [shape = 'u32[]', space=smem, size = 0x4, offset = 0x4, fixed_abs, tag = 'smem constant byte address 0x4 - core index']
  #allocation1 [shape = 'u32[144,128]{1,0:T(1,128)}', space=vmem, size = 0x12000, scoped, tag = 'internal scratch']
  %s0 = inlined_call_operand.vmem [shape: f32[16,16], index: 0, kind: input, shape index: {}]
  %s1 = inlined_call_operand.hbm [shape: f32[16,128], index: 1, kind: input, shape index: {}]
  %s2 = inlined_call_operand.vmem [shape: f32[1,128], index: 2, kind: input, shape index: {}]
  %s3 = inlined_call_operand.vmem [shape: f32[128,128], index: 3, kind: input, shape index: {}]
  %s4 = inlined_call_operand.vmem [shape: f32[1,128], index: 4, kind: input, shape index: {}]
  %s5 = inlined_call_operand.hbm [shape: f32[128,128], index: 5, kind: input, shape index: {}]
  %s6 = inlined_call_operand.vmem [shape: f32[1,128], index: 6, kind: input, shape index: {}]
  %s7 = inlined_call_operand.vmem [shape: f32[128,16], index: 7, kind: input, shape index: {}]
  %s8 = inlined_call_operand.vmem [shape: f32[1,16], index: 8, kind: input, shape index: {}]
  %s9 = inlined_call_operand.hbm [shape: f32[16,16], index: 9, kind: output, shape index: {}]
  %s10 = sld [smem:[#allocation0]]
  $region54: #{tpu_custom_call.1} parent=0
    _
  %s12 = ssub.s32 1, %s10
  %s13 = scalar_select 0, %s12, %s10
  $region1: #{tpu_custom_call.1} parent=0
    #allocation2 [shape = 'u8[8192]{0}', space=vmem, size = 0x2000, scoped, tag = 'input window, operand 1, single buffered']
    #allocation3 [shape = 's32[1]{0}', space=sflag, size = 0x4, scoped, tag = 'scoped memory for tpu_custom_call.1']
    #allocation4 [shape = 's32[1]{0}', space=sflag, size = 0x4, scoped, tag = 'scoped memory for tpu_custom_call.1']
    #allocation5 [shape = 'u8[65536]{0}', space=vmem, size = 0x10000, scoped, tag = 'input window, operand 5, single buffered']
    #allocation6 [shape = 's32[1]{0}', space=sflag, size = 0x4, scoped, tag = 'scoped memory for tpu_custom_call.1']
    #allocation7 [shape = 'u8[8192]{0}', space=vmem, size = 0x2000, scoped, tag = 'output window, operand 0, single buffered']
    %14 = vsyncpa [#allocation3], 0
    %15 = vsyncpa [#allocation6], 0
    %16 = vsyncpa [#allocation4], 0
    // Predicated region
    $region2: #{tpu_custom_call.1} parent=1 // pred_check
      _
    $region3: #{tpu_custom_call.1} parent=1 // pred_check_branch
      %18 = sbr.rel (0) target = $region5
    $region4: #{tpu_custom_call.1} parent=1 // pred_region
      _
    $region5: #{tpu_custom_call.1} parent=1 // pred_fallthru
      _
    // Predicated region
    $region6: #{tpu_custom_call.1} parent=1 // pred_check
      _
    $region7: #{tpu_custom_call.1} parent=1 // pred_check_branch
      %20 = sbr.rel (0) target = $region9
    $region8: #{tpu_custom_call.1} parent=1 // pred_region
      %s22 = ssub.s32 256, 256
      %23 = vsyncadd [#allocation3], %s22
      %s24 = sshll.u32 [#allocation2], 4
      %s25 = int_to_ptr.vmem [resolvable:$true] %s24
      %30 = dma.hbm_to_vmem [thread:$0]  %s1, 256, %s25, [#allocation3], 128, 128, 8
    $region9: #{tpu_custom_call.1} parent=1 // pred_fallthru
      _
    // Predicated region
    $region10: #{tpu_custom_call.1} parent=1 // pred_check
      _
    $region11: #{tpu_custom_call.1} parent=1 // pred_check_branch
      %32 = sbr.rel (0) target = $region13
    $region12: #{tpu_custom_call.1} parent=1 // pred_region
      _
    $region13: #{tpu_custom_call.1} parent=1 // pred_fallthru
      _
    // Predicated region
    $region14: #{tpu_custom_call.1} parent=1 // pred_check
      _
    $region15: #{tpu_custom_call.1} parent=1 // pred_check_branch
      %34 = sbr.rel (0) target = $region17
    $region16: #{tpu_custom_call.1} parent=1 // pred_region
      _
    $region17: #{tpu_custom_call.1} parent=1 // pred_fallthru
      _
    // Predicated region
    $region18: #{tpu_custom_call.1} parent=1 // pred_check
      _
    $region19: #{tpu_custom_call.1} parent=1 // pred_check_branch
      %36 = sbr.rel (0) target = $region21
    $region20: #{tpu_custom_call.1} parent=1 // pred_region
      _
    $region21: #{tpu_custom_call.1} parent=1 // pred_fallthru
      _
    // Predicated region
    $region22: #{tpu_custom_call.1} parent=1 // pred_check
      _
    $region23: #{tpu_custom_call.1} parent=1 // pred_check_branch
      %38 = sbr.rel (0) target = $region25
    $region24: #{tpu_custom_call.1} parent=1 // pred_region
      %s40 = ssub.s32 2048, 2048
      %41 = vsyncadd [#allocation6], %s40
      %s42 = sshll.u32 [#allocation5], 4
      %s43 = int_to_ptr.vmem [resolvable:$true] %s42
      %48 = dma.hbm_to_vmem [thread:$0]  %s5, 2048, %s43, [#allocation6], 128, 128, 8
    $region25: #{tpu_custom_call.1} parent=1 // pred_fallthru
      _
    // Predicated region
    $region26: #{tpu_custom_call.1} parent=1 // pred_check
      _
    $region27: #{tpu_custom_call.1} parent=1 // pred_check_branch
      %50 = sbr.rel (0) target = $region29
    $region28: #{tpu_custom_call.1} parent=1 // pred_region
      _
    $region29: #{tpu_custom_call.1} parent=1 // pred_fallthru
      _
    // Predicated region
    $region30: #{tpu_custom_call.1} parent=1 // pred_check
      _
    $region31: #{tpu_custom_call.1} parent=1 // pred_check_branch
      %52 = sbr.rel (0) target = $region33
    $region32: #{tpu_custom_call.1} parent=1 // pred_region
      _
    $region33: #{tpu_custom_call.1} parent=1 // pred_fallthru
      _
    // Predicated region
    $region34: #{tpu_custom_call.1} parent=1 // pred_check
      _
    $region35: #{tpu_custom_call.1} parent=1 // pred_check_branch
      %54 = sbr.rel (0) target = $region37
    $region36: #{tpu_custom_call.1} parent=1 // pred_region
      _
    $region37: #{tpu_custom_call.1} parent=1 // pred_fallthru
      _
    // Predicated region
    $region38: #{tpu_custom_call.1} parent=1 // pred_check
      _
    $region39: #{tpu_custom_call.1} parent=1 // pred_check_branch
      %56 = sbr.rel (0) target = $region41
    $region40: #{tpu_custom_call.1} parent=1 // pred_region
      %57 = dma.done [#allocation3], 256
    $region41: #{tpu_custom_call.1} parent=1 // pred_fallthru
      _
    // Predicated region
    $region42: #{tpu_custom_call.1} parent=1 // pred_check
      _
    $region43: #{tpu_custom_call.1} parent=1 // pred_check_branch
      %59 = sbr.rel (0) target = $region45
    $region44: #{tpu_custom_call.1} parent=1 // pred_region
      %60 = dma.done [#allocation6], 2048
    $region45: #{tpu_custom_call.1} parent=1 // pred_fallthru
      _
    %v61 = vld [vmem:[%s0] sm:$0xff]
    %v62 = vld [vmem:[%s0 + $0x8] sm:$0xff]
    %v63 = vtanh.pop %v61
    %v64 = vtanh.pop %v62
    %v65 = vld [vmem:[#allocation2] sm:$0xff]
    %v66 = vld [vmem:[#allocation2 + $0x8] sm:$0xff]
    %v67 = vld [vmem:[%s2] sm:$0x1]
    %v69 = vlaneseq
    %v70 = vshrl.u32 %v69, 7
    %v71 = vsub.s32 0, %v70
    %v72 = vrot.slane %v67, %v71
    %vm74 = vcmask 130048
    %v76 = vsel %vm74, %v63, 0
    %v79 = vsel %vm74, %v64, 0
    %81 = vmatprep.subr.mxu0 0.0
    %82 = vmatpush1.msra.mxu0 %v65
    %83 = vmatprep.subr.mxu0 0.0
    %84 = vmatpush1.msra.mxu0 %v66
    %85 = vmatprep.subr.mxu0 0.0
    %86 = vmatpush1.msra.mxu0 0.0
    %87 = vmatprep.subr.mxu0 0.0
    %88 = vmatpush1.msra.mxu0 0.0
    %89 = vmatprep.subr.mxu0 0.0
    %90 = vmatpush1.msra.mxu0 0.0
    %91 = vmatprep.subr.mxu0 0.0
    %92 = vmatpush1.msra.mxu0 0.0
    %93 = vmatprep.subr.mxu0 0.0
    %94 = vmatpush1.msra.mxu0 0.0
    %95 = vmatprep.subr.mxu0 0.0
    %96 = vmatpush1.msra.mxu0 0.0
    %97 = vmatprep.subr.mxu0 0.0
    %98 = vmatpush1.msra.mxu0 0.0
    %99 = vmatprep.subr.mxu0 0.0
    %100 = vmatpush1.msra.mxu0 0.0
    %101 = vmatprep.subr.mxu0 0.0
    %102 = vmatpush1.msra.mxu0 0.0
    %103 = vmatprep.subr.mxu0 0.0
    %104 = vmatpush1.msra.mxu0 0.0
    %105 = vmatprep.subr.mxu0 0.0
    %106 = vmatpush1.msra.mxu0 0.0
    %107 = vmatprep.subr.mxu0 0.0
    %108 = vmatpush1.msra.mxu0 0.0
    %109 = vmatprep.subr.mxu0 0.0
    %110 = vmatpush1.msra.mxu0 0.0
    %111 = vmatprep.subr.mxu0 0.0
    %112 = vmatpush1.msra.mxu0 0.0
    %113 = vmatprep.subr.mxu0 0.0
    %114 = vmatpush1.msra.mxu0 0.0
    %115 = vmatprep.subr.mxu0 0.0
    %116 = vmatpush1.msra.mxu0 0.0
    %117 = vmatprep.subr.mxu0 0.0
    %118 = vmatpush1.msra.mxu0 0.0
    %119 = vmatprep.subr.mxu0 0.0
    %120 = vmatpush1.msra.mxu0 0.0
    %121 = vmatprep.subr.mxu0 0.0
    %122 = vmatpush1.msra.mxu0 0.0
    %123 = vmatprep.subr.mxu0 0.0
    %124 = vmatpush1.msra.mxu0 0.0
    %125 = vmatprep.subr.mxu0 0.0
    %126 = vmatpush1.msra.mxu0 0.0
    %127 = vmatprep.subr.mxu0 0.0
    %128 = vmatpush1.msra.mxu0 0.0
    %129 = vmatprep.subr.mxu0 0.0
    %130 = vmatpush1.msra.mxu0 0.0
    %131 = vmatprep.subr.mxu0 0.0
    %132 = vmatpush1.msra.mxu0 0.0
    %133 = vmatprep.subr.mxu0 0.0
    %134 = vmatpush1.msra.mxu0 0.0
    %135 = vmatprep.subr.mxu0 0.0
    %136 = vmatpush1.msra.mxu0 0.0
    %137 = vmatprep.subr.mxu0 0.0
    %138 = vmatpush1.msra.mxu0 0.0
    %139 = vmatprep.subr.mxu0 0.0
    %140 = vmatpush1.msra.mxu0 0.0
    %141 = vmatprep.subr.mxu0 0.0
    %142 = vmatpush1.msra.mxu0 0.0
    %143 = vmatprep.subr.mxu0 0.0
    %144 = vmatpush1.msra.mxu0 0.0
    %145 = vmatprep.mubr.f32.mxu0 0.0
    %146 = vmatmul.mubr.f32.gmra.mrb[0].mxu0 %v76
    %v147 = vpop.f32.mrb[0].mxu0
    %v148 = vadd.f32 %v72, %v147
    %v149 = vpop.f32.mrb[0].mxu0
    %150 = vmatprep.mubr.f32.mxu0 0.0
    %151 = vmatmul.mubr.f32.gmra.mrb[0].mxu0 %v79
    %v152 = vpop.f32.mrb[0].mxu0
    %v153 = vadd.f32 %v72, %v152
    %v154 = vpop.f32.mrb[0].mxu0
    %155 = vdwg.mxu0
    %v156 = vmax.f32 %v148, 0.0
    %v157 = vmax.f32 %v153, 0.0
    %v158 = vld [vmem:[%s3] sm:$0xff]
    %v159 = vld [vmem:[%s3 + $0x8] sm:$0xff]
    %v160 = vld [vmem:[%s3 + $0x10] sm:$0xff]
    %v161 = vld [vmem:[%s3 + $0x18] sm:$0xff]
    %v162 = vld [vmem:[%s3 + $0x20] sm:$0xff]
    %v163 = vld [vmem:[%s3 + $0x28] sm:$0xff]
    %v164 = vld [vmem:[%s3 + $0x30] sm:$0xff]
    %v165 = vld [vmem:[%s3 + $0x38] sm:$0xff]
    %v166 = vld [vmem:[%s3 + $0x40] sm:$0xff]
    %v167 = vld [vmem:[%s3 + $0x48] sm:$0xff]
    %v168 = vld [vmem:[%s3 + $0x50] sm:$0xff]
    %v169 = vld [vmem:[%s3 + $0x58] sm:$0xff]
    %v170 = vld [vmem:[%s3 + $0x60] sm:$0xff]
    %v171 = vld [vmem:[%s3 + $0x68] sm:$0xff]
    %v172 = vld [vmem:[%s3 + $0x70] sm:$0xff]
    %v173 = vld [vmem:[%s3 + $0x78] sm:$0xff]
    %v174 = vld [vmem:[%s4] sm:$0x1]
    %v176 = vlaneseq
    %v177 = vshrl.u32 %v176, 7
    %v178 = vsub.s32 0, %v177
    %v179 = vrot.slane %v174, %v178
    %181 = vmatprep.subr.mxu0 0.0
    %182 = vmatpush1.msra.mxu0 %v158
    %183 = vmatprep.subr.mxu0 0.0
    %184 = vmatpush1.msra.mxu0 %v159
    %185 = vmatprep.subr.mxu0 0.0
    %186 = vmatpush1.msra.mxu0 %v160
    %187 = vmatprep.subr.mxu0 0.0
    %188 = vmatpush1.msra.mxu0 %v161
    %189 = vmatprep.subr.mxu0 0.0
    %190 = vmatpush1.msra.mxu0 %v162
    %191 = vmatprep.subr.mxu0 0.0
    %192 = vmatpush1.msra.mxu0 %v163
    %193 = vmatprep.subr.mxu0 0.0
    %194 = vmatpush1.msra.mxu0 %v164
    %195 = vmatprep.subr.mxu0 0.0
    %196 = vmatpush1.msra.mxu0 %v165
    %197 = vmatprep.subr.mxu0 0.0
    %198 = vmatpush1.msra.mxu0 %v166
    %199 = vmatprep.subr.mxu0 0.0
    %200 = vmatpush1.msra.mxu0 %v167
    %201 = vmatprep.subr.mxu0 0.0
    %202 = vmatpush1.msra.mxu0 %v168
    %203 = vmatprep.subr.mxu0 0.0
    %204 = vmatpush1.msra.mxu0 %v169
    %205 = vmatprep.subr.mxu0 0.0
    %206 = vmatpush1.msra.mxu0 %v170
    %207 = vmatprep.subr.mxu0 0.0
    %208 = vmatpush1.msra.mxu0 %v171
    %209 = vmatprep.subr.mxu0 0.0
    %210 = vmatpush1.msra.mxu0 %v172
    %211 = vmatprep.subr.mxu0 0.0
    %212 = vmatpush1.msra.mxu0 %v173
    %213 = vmatprep.subr.mxu0 0.0
    %214 = vmatpush1.msra.mxu0 0.0
    %215 = vmatprep.subr.mxu0 0.0
    %216 = vmatpush1.msra.mxu0 0.0
    %217 = vmatprep.subr.mxu0 0.0
    %218 = vmatpush1.msra.mxu0 0.0
    %219 = vmatprep.subr.mxu0 0.0
    %220 = vmatpush1.msra.mxu0 0.0
    %221 = vmatprep.subr.mxu0 0.0
    %222 = vmatpush1.msra.mxu0 0.0
    %223 = vmatprep.subr.mxu0 0.0
    %224 = vmatpush1.msra.mxu0 0.0
    %225 = vmatprep.subr.mxu0 0.0
    %226 = vmatpush1.msra.mxu0 0.0
    %227 = vmatprep.subr.mxu0 0.0
    %228 = vmatpush1.msra.mxu0 0.0
    %229 = vmatprep.subr.mxu0 0.0
    %230 = vmatpush1.msra.mxu0 0.0
    %231 = vmatprep.subr.mxu0 0.0
    %232 = vmatpush1.msra.mxu0 0.0
    %233 = vmatprep.subr.mxu0 0.0
    %234 = vmatpush1.msra.mxu0 0.0
    %235 = vmatprep.subr.mxu0 0.0
    %236 = vmatpush1.msra.mxu0 0.0
    %237 = vmatprep.subr.mxu0 0.0
    %238 = vmatpush1.msra.mxu0 0.0
    %239 = vmatprep.subr.mxu0 0.0
    %240 = vmatpush1.msra.mxu0 0.0
    %241 = vmatprep.subr.mxu0 0.0
    %242 = vmatpush1.msra.mxu0 0.0
    %243 = vmatprep.subr.mxu0 0.0
    %244 = vmatpush1.msra.mxu0 0.0
    %245 = vmatprep.mubr.f32.mxu0 0.0
    %246 = vmatmul.mubr.f32.gmra.mrb[0].mxu0 %v156
    %v247 = vpop.f32.mrb[0].mxu0
    %v248 = vadd.f32 %v179, %v247
    %v249 = vpop.f32.mrb[0].mxu0
    %250 = vmatprep.mubr.f32.mxu0 0.0
    %251 = vmatmul.mubr.f32.gmra.mrb[0].mxu0 %v157
    %v252 = vpop.f32.mrb[0].mxu0
    %v253 = vadd.f32 %v179, %v252
    %v254 = vpop.f32.mrb[0].mxu0
    %255 = vdwg.mxu0
    %v256 = vmax.f32 %v248, 0.0
    %v257 = vmax.f32 %v253, 0.0
    %v258 = vld [vmem:[#allocation5] sm:$0xff]
    %v259 = vld [vmem:[#allocation5 + $0x8] sm:$0xff]
    %v260 = vld [vmem:[#allocation5 + $0x10] sm:$0xff]
    %v261 = vld [vmem:[#allocation5 + $0x18] sm:$0xff]
    %v262 = vld [vmem:[#allocation5 + $0x20] sm:$0xff]
    %v263 = vld [vmem:[#allocation5 + $0x28] sm:$0xff]
    %v264 = vld [vmem:[#allocation5 + $0x30] sm:$0xff]
    %v265 = vld [vmem:[#allocation5 + $0x38] sm:$0xff]
    %v266 = vld [vmem:[#allocation5 + $0x40] sm:$0xff]
    %v267 = vld [vmem:[#allocation5 + $0x48] sm:$0xff]
    %v268 = vld [vmem:[#allocation5 + $0x50] sm:$0xff]
    %v269 = vld [vmem:[#allocation5 + $0x58] sm:$0xff]
    %v270 = vld [vmem:[#allocation5 + $0x60] sm:$0xff]
    %v271 = vld [vmem:[#allocation5 + $0x68] sm:$0xff]
    %v272 = vld [vmem:[#allocation5 + $0x70] sm:$0xff]
    %v273 = vld [vmem:[#allocation5 + $0x78] sm:$0xff]
    %v274 = vld [vmem:[%s6] sm:$0x1]
    %v276 = vlaneseq
    %v277 = vshrl.u32 %v276, 7
    %v278 = vsub.s32 0, %v277
    %v279 = vrot.slane %v274, %v278
    %281 = vmatprep.subr.mxu0 0.0
    %282 = vmatpush1.msra.mxu0 %v258
    %283 = vmatprep.subr.mxu0 0.0
    %284 = vmatpush1.msra.mxu0 %v259
    %285 = vmatprep.subr.mxu0 0.0
    %286 = vmatpush1.msra.mxu0 %v260
    %287 = vmatprep.subr.mxu0 0.0
    %288 = vmatpush1.msra.mxu0 %v261
    %289 = vmatprep.subr.mxu0 0.0
    %290 = vmatpush1.msra.mxu0 %v262
    %291 = vmatprep.subr.mxu0 0.0
    %292 = vmatpush1.msra.mxu0 %v263
    %293 = vmatprep.subr.mxu0 0.0
    %294 = vmatpush1.msra.mxu0 %v264
    %295 = vmatprep.subr.mxu0 0.0
    %296 = vmatpush1.msra.mxu0 %v265
    %297 = vmatprep.subr.mxu0 0.0
    %298 = vmatpush1.msra.mxu0 %v266
    %299 = vmatprep.subr.mxu0 0.0
    %300 = vmatpush1.msra.mxu0 %v267
    %301 = vmatprep.subr.mxu0 0.0
    %302 = vmatpush1.msra.mxu0 %v268
    %303 = vmatprep.subr.mxu0 0.0
    %304 = vmatpush1.msra.mxu0 %v269
    %305 = vmatprep.subr.mxu0 0.0
    %306 = vmatpush1.msra.mxu0 %v270
    %307 = vmatprep.subr.mxu0 0.0
    %308 = vmatpush1.msra.mxu0 %v271
    %309 = vmatprep.subr.mxu0 0.0
    %310 = vmatpush1.msra.mxu0 %v272
    %311 = vmatprep.subr.mxu0 0.0
    %312 = vmatpush1.msra.mxu0 %v273
    %313 = vmatprep.subr.mxu0 0.0
    %314 = vmatpush1.msra.mxu0 0.0
    %315 = vmatprep.subr.mxu0 0.0
    %316 = vmatpush1.msra.mxu0 0.0
    %317 = vmatprep.subr.mxu0 0.0
    %318 = vmatpush1.msra.mxu0 0.0
    %319 = vmatprep.subr.mxu0 0.0
    %320 = vmatpush1.msra.mxu0 0.0
    %321 = vmatprep.subr.mxu0 0.0
    %322 = vmatpush1.msra.mxu0 0.0
    %323 = vmatprep.subr.mxu0 0.0
    %324 = vmatpush1.msra.mxu0 0.0
    %325 = vmatprep.subr.mxu0 0.0
    %326 = vmatpush1.msra.mxu0 0.0
    %327 = vmatprep.subr.mxu0 0.0
    %328 = vmatpush1.msra.mxu0 0.0
    %329 = vmatprep.subr.mxu0 0.0
    %330 = vmatpush1.msra.mxu0 0.0
    %331 = vmatprep.subr.mxu0 0.0
    %332 = vmatpush1.msra.mxu0 0.0
    %333 = vmatprep.subr.mxu0 0.0
    %334 = vmatpush1.msra.mxu0 0.0
    %335 = vmatprep.subr.mxu0 0.0
    %336 = vmatpush1.msra.mxu0 0.0
    %337 = vmatprep.subr.mxu0 0.0
    %338 = vmatpush1.msra.mxu0 0.0
    %339 = vmatprep.subr.mxu0 0.0
    %340 = vmatpush1.msra.mxu0 0.0
    %341 = vmatprep.subr.mxu0 0.0
    %342 = vmatpush1.msra.mxu0 0.0
    %343 = vmatprep.subr.mxu0 0.0
    %344 = vmatpush1.msra.mxu0 0.0
    %345 = vmatprep.mubr.f32.mxu0 0.0
    %346 = vmatmul.mubr.f32.gmra.mrb[0].mxu0 %v256
    %v347 = vpop.f32.mrb[0].mxu0
    %v348 = vadd.f32 %v279, %v347
    %v349 = vpop.f32.mrb[0].mxu0
    %350 = vmatprep.mubr.f32.mxu0 0.0
    %351 = vmatmul.mubr.f32.gmra.mrb[0].mxu0 %v257
    %v352 = vpop.f32.mrb[0].mxu0
    %v353 = vadd.f32 %v279, %v352
    %v354 = vpop.f32.mrb[0].mxu0
    %355 = vdwg.mxu0
    %v356 = vmax.f32 %v348, 0.0
    %v357 = vmax.f32 %v353, 0.0
    %v358 = vld [vmem:[%s7] sm:$0xff]
    %v359 = vld [vmem:[%s7 + $0x8] sm:$0xff]
    %v360 = vld [vmem:[%s7 + $0x10] sm:$0xff]
    %v361 = vld [vmem:[%s7 + $0x18] sm:$0xff]
    %v362 = vld [vmem:[%s7 + $0x20] sm:$0xff]
    %v363 = vld [vmem:[%s7 + $0x28] sm:$0xff]
    %v364 = vld [vmem:[%s7 + $0x30] sm:$0xff]
    %v365 = vld [vmem:[%s7 + $0x38] sm:$0xff]
    %v366 = vld [vmem:[%s7 + $0x40] sm:$0xff]
    %v367 = vld [vmem:[%s7 + $0x48] sm:$0xff]
    %v368 = vld [vmem:[%s7 + $0x50] sm:$0xff]
    %v369 = vld [vmem:[%s7 + $0x58] sm:$0xff]
    %v370 = vld [vmem:[%s7 + $0x60] sm:$0xff]
    %v371 = vld [vmem:[%s7 + $0x68] sm:$0xff]
    %v372 = vld [vmem:[%s7 + $0x70] sm:$0xff]
    %v373 = vld [vmem:[%s7 + $0x78] sm:$0xff]
    %v374 = vld [vmem:[%s8] sm:$0x1]
    %v376 = vlaneseq
    %v377 = vshrl.u32 %v376, 7
    %v378 = vsub.s32 0, %v377
    %v379 = vrot.slane %v374, %v378
    %381 = vmatprep.subr.mxu0 0.0
    %382 = vmatpush1.msra.mxu0 %v358
    %383 = vmatprep.subr.mxu0 0.0
    %384 = vmatpush1.msra.mxu0 %v359
    %385 = vmatprep.subr.mxu0 0.0
    %386 = vmatpush1.msra.mxu0 %v360
    %387 = vmatprep.subr.mxu0 0.0
    %388 = vmatpush1.msra.mxu0 %v361
    %389 = vmatprep.subr.mxu0 0.0
    %390 = vmatpush1.msra.mxu0 %v362
    %391 = vmatprep.subr.mxu0 0.0
    %392 = vmatpush1.msra.mxu0 %v363
    %393 = vmatprep.subr.mxu0 0.0
    %394 = vmatpush1.msra.mxu0 %v364
    %395 = vmatprep.subr.mxu0 0.0
    %396 = vmatpush1.msra.mxu0 %v365
    %397 = vmatprep.subr.mxu0 0.0
    %398 = vmatpush1.msra.mxu0 %v366
    %399 = vmatprep.subr.mxu0 0.0
    %400 = vmatpush1.msra.mxu0 %v367
    %401 = vmatprep.subr.mxu0 0.0
    %402 = vmatpush1.msra.mxu0 %v368
    %403 = vmatprep.subr.mxu0 0.0
    %404 = vmatpush1.msra.mxu0 %v369
    %405 = vmatprep.subr.mxu0 0.0
    %406 = vmatpush1.msra.mxu0 %v370
    %407 = vmatprep.subr.mxu0 0.0
    %408 = vmatpush1.msra.mxu0 %v371
    %409 = vmatprep.subr.mxu0 0.0
    %410 = vmatpush1.msra.mxu0 %v372
    %411 = vmatprep.subr.mxu0 0.0
    %412 = vmatpush1.msra.mxu0 %v373
    %413 = vmatprep.subr.mxu0 0.0
    %414 = vmatpush1.msra.mxu0 0.0
    %415 = vmatprep.subr.mxu0 0.0
    %416 = vmatpush1.msra.mxu0 0.0
    %417 = vmatprep.subr.mxu0 0.0
    %418 = vmatpush1.msra.mxu0 0.0
    %419 = vmatprep.subr.mxu0 0.0
    %420 = vmatpush1.msra.mxu0 0.0
    %421 = vmatprep.subr.mxu0 0.0
    %422 = vmatpush1.msra.mxu0 0.0
    %423 = vmatprep.subr.mxu0 0.0
    %424 = vmatpush1.msra.mxu0 0.0
    %425 = vmatprep.subr.mxu0 0.0
    %426 = vmatpush1.msra.mxu0 0.0
    %427 = vmatprep.subr.mxu0 0.0
    %428 = vmatpush1.msra.mxu0 0.0
    %429 = vmatprep.subr.mxu0 0.0
    %430 = vmatpush1.msra.mxu0 0.0
    %431 = vmatprep.subr.mxu0 0.0
    %432 = vmatpush1.msra.mxu0 0.0
    %433 = vmatprep.subr.mxu0 0.0
    %434 = vmatpush1.msra.mxu0 0.0
    %435 = vmatprep.subr.mxu0 0.0
    %436 = vmatpush1.msra.mxu0 0.0
    %437 = vmatprep.subr.mxu0 0.0
    %438 = vmatpush1.msra.mxu0 0.0
    %439 = vmatprep.subr.mxu0 0.0
    %440 = vmatpush1.msra.mxu0 0.0
    %441 = vmatprep.subr.mxu0 0.0
    %442 = vmatpush1.msra.mxu0 0.0
    %443 = vmatprep.subr.mxu0 0.0
    %444 = vmatpush1.msra.mxu0 0.0
    %445 = vmatprep.mubr.f32.mxu0 0.0
    %446 = vmatmul.mubr.f32.gmra.mrb[0].mxu0 %v356
    %v447 = vpop.f32.mrb[0].mxu0
    %v448 = vadd.f32 %v379, %v447
    %v449 = vpop.f32.mrb[0].mxu0
    %450 = vmatprep.mubr.f32.mxu0 0.0
    %451 = vmatmul.mubr.f32.gmra.mrb[0].mxu0 %v357
    %v452 = vpop.f32.mrb[0].mxu0
    %v453 = vadd.f32 %v379, %v452
    %v454 = vpop.f32.mrb[0].mxu0
    %455 = vdwg.mxu0
    %456 = vst.msk [vmem:[#allocation7] sm:$0xff] %vm74, %v448
    %457 = vst.msk [vmem:[#allocation7 + $0x8] sm:$0xff] %vm74, %v453
    // Predicated region
    $region46: #{tpu_custom_call.1} parent=1 // pred_check
      _
    $region47: #{tpu_custom_call.1} parent=1 // pred_check_branch
      %459 = sbr.rel (0) target = $region49
    $region48: #{tpu_custom_call.1} parent=1 // pred_region
      %s461 = ssub.s32 256, 256
      %462 = vsyncadd [#allocation4], %s461
      %s463 = sshll.u32 [#allocation7], 4
      %s464 = int_to_ptr.vmem [resolvable:$true] %s463
      %469 = dma.vmem_to_hbm [thread:$0]  %s464, 256, %s9, [#allocation4], 128, 128, 8
    $region49: #{tpu_custom_call.1} parent=1 // pred_fallthru
      _
    // Predicated region
    $region50: #{tpu_custom_call.1} parent=1 // pred_check
      _
    $region51: #{tpu_custom_call.1} parent=1 // pred_check_branch
      %471 = sbr.rel (0) target = $region53
    $region52: #{tpu_custom_call.1} parent=1 // pred_region
      %472 = dma.done [#allocation4], 256
    $region53: #{tpu_custom_call.1} parent=1 // pred_fallthru
      _
    %473 = vsyncpa [#allocation3], 1
    %474 = vsyncpa [#allocation6], 1
    %475 = vsyncpa [#allocation4], 1

</llo_original>
